<compile_context>
chip_gen: v7x
topology: tpu7x:2x2x1
jax: 0.10.0
libtpu: 0.0.40
codegen_flags: <defaults>
</compile_context>

<pallas_src>
import functools

import jax
import jax.numpy as jnp
from jax import lax
from jax.experimental import pallas as pl
from jax.experimental.pallas import tpu as pltpu


# ----------------------------------------------------------------------------
# Kernels
# ----------------------------------------------------------------------------

def _slot_gate_kernel_flat(q_ref, cw_ref, vgt_ref, o_ref, *, T, H, chunk_t):
    """Lane-dense path: q/out viewed as (BB, T*H).

    q_ref:   (BB, T*H)  query block (lane-dense last dim)
    cw_ref:  (BB, H)    precomputed Wc(c) for this block
    vgt_ref: (H, H)     Vg.weight.T (in, out) -- pre-transposed in the wrapper
    o_ref:   (BB, T*H)
    """
    bb = q_ref.shape[0]
    lane = chunk_t * H
    n_full = T // chunk_t

    cw = cw_ref[...].astype(jnp.float32)                        # (BB, H)
    cw_rep = (jnp.concatenate([cw] * chunk_t, axis=-1)
              if chunk_t > 1 else cw)                           # (BB, lane)

    # s_rep[:, j*H:(j+1)*H] accumulates tanh(q_t + cw) for slot j of each chunk.
    # tanh/add run at full 128-lane utilisation; no (BB,T,H) f32 temp exists.
    s_rep = jnp.zeros((bb, lane), jnp.float32)
    for c in range(n_full):
        qc = q_ref[:, c * lane:(c + 1) * lane].astype(jnp.float32)
        s_rep = s_rep + jnp.tanh(qc + cw_rep)

    # Fold the chunk_t slots down to (BB, H) (cheap VALU adds).
    s = s_rep[:, 0:H]
    for j in range(1, chunk_t):
        s = s + s_rep[:, j * H:(j + 1) * H]
    # Remainder slots (T % chunk_t), one at a time.
    for t in range(n_full * chunk_t, T):
        qt = q_ref[:, t * H:(t + 1) * H].astype(jnp.float32)
        s = s + jnp.tanh(qt + cw)

    # gate = (sum_t tanh(q_t + Wc c)) @ Vg.T -- canonical [M,K]x[K,N] MXU form.
    gate = jnp.dot(s, vgt_ref[...].astype(jnp.float32),
                   preferred_element_type=jnp.float32).astype(o_ref.dtype)
    gate_rep = (jnp.concatenate([gate] * chunk_t, axis=-1)
                if chunk_t > 1 else gate)                       # (BB, lane)

    # Epilogue: out_t = q_t * gate, written as lane-dense (128-aligned) stores.
    for c in range(n_full):
        sl = slice(c * lane, (c + 1) * lane)
        o_ref[:, sl] = (q_ref[:, sl] * gate_rep).astype(o_ref.dtype)
    for t in range(n_full * chunk_t, T):
        sl = slice(t * H, (t + 1) * H)
        o_ref[:, sl] = (q_ref[:, sl] * gate).astype(o_ref.dtype)


def _slot_gate_kernel_3d(q_ref, cw_ref, vgt_ref, o_ref):
    """Fallback path for batch counts with no flat-friendly block size.

    q_ref: (BB, T, H), cw_ref: (BB, 1, H), vgt_ref: (H, H) = Vg.weight.T
    """
    q = q_ref[...]
    cw = cw_ref[...].astype(jnp.float32)                        # (BB, 1, H)
    g = jnp.tanh(q.astype(jnp.float32) + cw)                    # (BB, T, H) f32 (budgeted)
    s = jnp.sum(g, axis=1)                                      # (BB, H) f32
    gate = jnp.dot(s, vgt_ref[...].astype(jnp.float32),
                   preferred_element_type=jnp.float32).astype(o_ref.dtype)
    o_ref[...] = (q * gate[:, None, :]).astype(o_ref.dtype)


# ----------------------------------------------------------------------------
# Wrapper / tiling heuristics
# ----------------------------------------------------------------------------

def _vmem_capacity_bytes():
    """Per-core VMEM capacity; conservative 64 MiB (v7x) if the query fails."""
    try:
        cap = int(pltpu.get_tpu_info().vmem_capacity_bytes)
        if cap > 0:
            return cap
    except Exception:
        pass
    return 64 * 1024 * 1024


def _divisors(n):
    ds, d = set(), 1
    while d * d <= n:
        if n % d == 0:
            ds.add(d)
            ds.add(n // d)
        d += 1
    return sorted(ds)


def _pick_chunk_t(T, H):
    """Smallest group of consecutive time slots whose lane width is a multiple of
    128 (full vregs), bounded so chunks stay register-friendly."""
    if H % 128 == 0:
        return 1
    max_k = max(1, min(T, 1024 // max(H, 1)))
    for k in range(1, max_k + 1):
        if (k * H) % 128 == 0:
            return k
    return max(1, min(T, 128 // max(H, 1)))


def _pick_block_b(B, row_bytes, row_cap_flat, row_cap_3d, flat_allowed):
    """Pick (block_b, use_flat).

    The flat layout puts the batch block in the sublane dim of a 2-D array, so it
    needs block_b % 8 == 0 (or block_b == B).  The 3-D fallback keeps the batch
    block as a leading dim and accepts any divisor of B.
    """
    target_tile_bytes = 6 * 1024 * 1024          # ~6 MiB of q per grid step
    soft = max(1, target_tile_bytes // max(row_bytes, 1))
    # Keep >=8 grid steps (>=4 per v7x TensorCore) when the problem is big enough.
    if B * row_bytes >= 8 * target_tile_bytes and B >= 8:
        soft = min(soft, max(1, B // 8))

    divs = _divisors(B)

    if flat_allowed:
        cap = max(1, min(row_cap_flat, B))
        cands = [d for d in divs if d % 8 == 0 and d <= min(soft, cap)]
        even = [d for d in cands if (B // d) % 2 == 0]
        if even:
            return max(even), True
        if cands:
            return max(cands), True
        # Small problems: take the whole batch in one lane-dense step.
        if B <= cap and (B < 8 or B * row_bytes <= 2 * target_tile_bytes):
            return B, True

    cap = max(1, min(row_cap_3d, B))
    cands = ([d for d in divs if d <= min(soft, cap)]
             or [d for d in divs if d <= cap] or [1])
    even = [d for d in cands if (B // d) % 2 == 0]
    return (max(even) if even else max(cands)), False


def slot_gate(q, c, wc_weight, vg_weight, *, block_b=None):
    """
    q:         (..., T, H)
    c:         (..., H)
    wc_weight: (H, H)  torch.nn.Linear (out, in) layout, bias-free
    vg_weight: (H, H)  torch.nn.Linear (out, in) layout, bias-free
    returns    (..., T, H) == q * sum_T(Vg(tanh(q + Wc(c))))
    """
    # TODO(synk): only_gate=True path (return the (..., 1, H) gate alone) is not
    # exposed; this implements the module's default forward (q * gate).
    orig_shape = q.shape
    *lead, T, H = q.shape
    B = 1
    for d in lead:
        B *= d
    q = q.reshape(B, T, H)
    c = c.reshape(B, H)

    itemsize = jnp.dtype(q.dtype).itemsize
    wsize = jnp.dtype(vg_weight.dtype).itemsize
    row_bytes = T * H * itemsize
    row_f32 = T * H * 4

    # Hoist the tiny Wc matmul out of the kernel: one XLA dot over the whole batch
    # (c @ Wc.T via contracting Wc's "in" dim), so Wc never occupies per-step VMEM.
    cw = lax.dot_general(
        c, wc_weight,
        dimension_numbers=(((1,), (1,)), ((), ())),
        preferred_element_type=jnp.float32,
    ).astype(q.dtype)                                           # (B, H)

    # One-time transpose of Vg so the in-kernel dot is the canonical [M,K]x[K,N].
    vgt = vg_weight.T                                           # (H_in, H_out)

    # --- generation-aware VMEM budget -------------------------------------
    vmem_cap = _vmem_capacity_bytes()
    ceiling = int(0.60 * vmem_cap)                              # 40% headroom
    weight_bytes = 2 * H * H * wsize                            # double-buffered Vg.T
    # TODO(synk): for very large H, single-buffer the constant Vg.T block instead
    # of paying for two copies (pl.Buffered(1) or a one-shot DMA into scratch).
    small = 2 * H * itemsize + 16 * max(H, 128) * 4             # cw + f32 scratch rows
    per_row_flat = 5 * row_bytes + small                        # 2x in + 2x out + headroom
    per_row_3d = 4 * row_bytes + 2 * row_f32 + small            # + full-tile f32 tanh temp
    avail = max(ceiling - weight_bytes - (4 << 20), per_row_flat)
    row_cap_flat = max(1, avail // per_row_flat)
    row_cap_3d = max(1, avail // per_row_3d)

    chunk_t = _pick_chunk_t(T, H)
    flat_allowed = (T + chunk_t - 1) // chunk_t <= 128          # bound in-kernel unrolling

    if block_b is None:
        block_b, use_flat = _pick_block_b(B, row_bytes, row_cap_flat,
                                          row_cap_3d, flat_allowed)
    else:
        use_flat = flat_allowed and (block_b % 8 == 0 or block_b == B)
    assert B % block_b == 0

    vmem_limit = int(max(16 << 20, ceiling))
    compiler_params = pltpu.CompilerParams(
        dimension_semantics=("parallel",),
        vmem_limit_bytes=vmem_limit,
    )

    if use_flat:
        qf = q.reshape(B, T * H)                                # free (contiguous)
        kernel = functools.partial(_slot_gate_kernel_flat,
                                   T=T, H=H, chunk_t=chunk_t)
        out = pl.pallas_call(
            kernel,
            out_shape=jax.ShapeDtypeStruct((B, T * H), q.dtype),
            grid_spec=pltpu.PrefetchScalarGridSpec(
                num_scalar_prefetch=0,
                grid=(B // block_b,),
                in_specs=[
                    pl.BlockSpec((block_b, T * H), lambda b: (b, 0)),
                    pl.BlockSpec((block_b, H), lambda b: (b, 0)),
                    pl.BlockSpec((H, H), lambda b: (0, 0)),
                ],
                out_specs=pl.BlockSpec((block_b, T * H), lambda b: (b, 0)),
            ),
            compiler_params=compiler_params,
        )(qf, cw, vgt)
    else:
        out = pl.pallas_call(
            _slot_gate_kernel_3d,
            out_shape=jax.ShapeDtypeStruct((B, T, H), q.dtype),
            grid_spec=pltpu.PrefetchScalarGridSpec(
                num_scalar_prefetch=0,
                grid=(B // block_b,),
                in_specs=[
                    pl.BlockSpec((block_b, T, H), lambda b: (b, 0, 0)),
                    pl.BlockSpec((block_b, 1, H), lambda b: (b, 0, 0)),
                    pl.BlockSpec((H, H), lambda b: (0, 0)),
                ],
                out_specs=pl.BlockSpec((block_b, T, H), lambda b: (b, 0, 0)),
            ),
            compiler_params=compiler_params,
        )(q, cw.reshape(B, 1, H), vgt)

    return out.reshape(orig_shape)


def slot_gate_ref(q, c, wc_weight, vg_weight):
    cw = c @ wc_weight.T                        # (B, H)
    g = jnp.tanh(q + cw[:, None, :])            # (B, T, H)
    g = g @ vg_weight.T                         # (B, T, H)
    g = jnp.sum(g, axis=-2, keepdims=True)      # (B, 1, H)
    return q * g


if __name__ == "__main__":
    B, T, H = 2, 8, 32
    key = jax.random.PRNGKey(0)
    kq, kc, kw1, kw2 = jax.random.split(key, 4)

    q = jax.random.normal(kq, (B, T, H), dtype=jnp.float32)
    c = jax.random.normal(kc, (B, H), dtype=jnp.float32)

    # Deterministic parameter init (uniform, Linear-style fan_in scaling).
    bound = 1.0 / (H ** 0.5)
    wc_weight = jax.random.uniform(kw1, (H, H), jnp.float32, -bound, bound)
    vg_weight = jax.random.uniform(kw2, (H, H), jnp.float32, -bound, bound)

    out = jax.block_until_ready(slot_gate(q, c, wc_weight, vg_weight))

    ref = slot_gate_ref(q, c, wc_weight, vg_weight)
    assert out.shape == (B, T, H)
    # The T-sum is reordered before the Vg matmul (exact algebraically, slightly
    # different f32 summation order), hence the 1e-4 tolerance.
    assert jnp.allclose(out, ref, atol=1e-4, rtol=1e-4), "mismatch vs reference"

    print("KERNEL_OK")
</pallas_src>

<mosaic_0001>
module attributes {stable_mosaic.version = 11 : i64} {
  func.func @_slot_gate_kernel_flat(%arg0: i32, %arg1: memref<2x256xf32, #tpu.memory_space<vmem>>, %arg2: memref<2x32xf32, #tpu.memory_space<vmem>>, %arg3: memref<32x32xf32, #tpu.memory_space<vmem>>, %arg4: memref<2x256xf32, #tpu.memory_space<vmem>>) attributes {dimension_semantics = [#tpu.dimension_semantics<parallel>], iteration_bounds = array<i64: 1>, scalar_prefetch = 0 : i64, scratch_operands = 0 : i64, tpu.core_type = #tpu.core_type<tc>, window_params = [{transform_indices = @transform_0, window_bounds = array<i64: 2, 256>}, {transform_indices = @transform_1, window_bounds = array<i64: 2, 32>}, {pipeline_mode = #tpu.pipeline_mode<synchronous>, transform_indices = @transform_2, window_bounds = array<i64: 32, 32>}, {transform_indices = @transform_3, window_bounds = array<i64: 2, 256>}]} {
    %c0 = arith.constant 0 : index
    %c0_0 = arith.constant 0 : index
    %0 = vector.load %arg2[%c0, %c0_0] : memref<2x32xf32, #tpu.memory_space<vmem>>, vector<2x32xf32>
    %1 = tpu.concatenate %0, %0, %0, %0 in 1 : vector<2x32xf32>, vector<2x32xf32>, vector<2x32xf32>, vector<2x32xf32> -> vector<2x128xf32>
    %cst = arith.constant 0.000000e+00 : f32
    %2 = vector.broadcast %cst : f32 to vector<2x128xf32>
    %c0_1 = arith.constant 0 : index
    %c0_2 = arith.constant 0 : index
    %3 = vector.load %arg1[%c0_1, %c0_2] : memref<2x256xf32, #tpu.memory_space<vmem>>, vector<2x128xf32>
    %4 = arith.addf %3, %1 : vector<2x128xf32>
    %5 = math.tanh %4 : vector<2x128xf32>
    %6 = arith.addf %2, %5 : vector<2x128xf32>
    %c0_3 = arith.constant 0 : index
    %c128 = arith.constant 128 : index
    %7 = vector.load %arg1[%c0_3, %c128] : memref<2x256xf32, #tpu.memory_space<vmem>>, vector<2x128xf32>
    %8 = arith.addf %7, %1 : vector<2x128xf32>
    %9 = math.tanh %8 : vector<2x128xf32>
    %10 = arith.addf %6, %9 : vector<2x128xf32>
    %11 = vector.extract_strided_slice %10 {offsets = [0, 0], sizes = [2, 32], strides = [1, 1]} : vector<2x128xf32> to vector<2x32xf32>
    %12 = vector.extract_strided_slice %10 {offsets = [0, 32], sizes = [2, 32], strides = [1, 1]} : vector<2x128xf32> to vector<2x32xf32>
    %13 = arith.addf %11, %12 : vector<2x32xf32>
    %14 = vector.extract_strided_slice %10 {offsets = [0, 64], sizes = [2, 32], strides = [1, 1]} : vector<2x128xf32> to vector<2x32xf32>
    %15 = arith.addf %13, %14 : vector<2x32xf32>
    %16 = vector.extract_strided_slice %10 {offsets = [0, 96], sizes = [2, 32], strides = [1, 1]} : vector<2x128xf32> to vector<2x32xf32>
    %17 = arith.addf %15, %16 : vector<2x32xf32>
    %c0_4 = arith.constant 0 : index
    %c0_5 = arith.constant 0 : index
    %18 = vector.load %arg3[%c0_4, %c0_5] : memref<32x32xf32, #tpu.memory_space<vmem>>, vector<32x32xf32>
    %cst_6 = arith.constant dense<0.000000e+00> : vector<2x32xf32>
    %19 = tpu.matmul %17, %18, %cst_6 {dimension_numbers = #tpu.dot_dimension_numbers<[1], [0], [0], [1], [0, 0, 1, 1], [], []>} : vector<2x32xf32>, vector<32x32xf32>, vector<2x32xf32> -> vector<2x32xf32>
    %20 = tpu.concatenate %19, %19, %19, %19 in 1 : vector<2x32xf32>, vector<2x32xf32>, vector<2x32xf32>, vector<2x32xf32> -> vector<2x128xf32>
    %c0_7 = arith.constant 0 : index
    %c0_8 = arith.constant 0 : index
    %21 = vector.load %arg1[%c0_7, %c0_8] : memref<2x256xf32, #tpu.memory_space<vmem>>, vector<2x128xf32>
    %22 = arith.mulf %21, %20 : vector<2x128xf32>
    %c0_9 = arith.constant 0 : index
    %c0_10 = arith.constant 0 : index
    %23 = vector.load %arg4[%c0_9, %c0_10] : memref<2x256xf32, #tpu.memory_space<vmem>>, vector<2x128xf32>
    tpu.vector_store %arg4[%c0_9, %c0_10], %22 {strides = array<i32>} : memref<2x256xf32, #tpu.memory_space<vmem>>, vector<2x128xf32>,
    %c0_11 = arith.constant 0 : index
    %c128_12 = arith.constant 128 : index
    %24 = vector.load %arg1[%c0_11, %c128_12] : memref<2x256xf32, #tpu.memory_space<vmem>>, vector<2x128xf32>
    %25 = arith.mulf %24, %20 : vector<2x128xf32>
    %c0_13 = arith.constant 0 : index
    %c128_14 = arith.constant 128 : index
    %26 = vector.load %arg4[%c0_13, %c128_14] : memref<2x256xf32, #tpu.memory_space<vmem>>, vector<2x128xf32>
    tpu.vector_store %arg4[%c0_13, %c128_14], %25 {strides = array<i32>} : memref<2x256xf32, #tpu.memory_space<vmem>>, vector<2x128xf32>,
    return
  }
  func.func @transform_0(%arg0: i32) -> (i32, i32) {
    %c0_i32 = arith.constant 0 : i32
    %c0_i32_0 = arith.constant 0 : i32
    return %arg0, %c0_i32 : i32, i32
  }
  func.func @transform_1(%arg0: i32) -> (i32, i32) {
    %c0_i32 = arith.constant 0 : i32
    %c0_i32_0 = arith.constant 0 : i32
    return %arg0, %c0_i32 : i32, i32
  }
  func.func @transform_2(%arg0: i32) -> (i32, i32) {
    %c0_i32 = arith.constant 0 : i32
    %c0_i32_0 = arith.constant 0 : i32
    %c0_i32_1 = arith.constant 0 : i32
    return %c0_i32, %c0_i32_0 : i32, i32
  }
  func.func @transform_3(%arg0: i32) -> (i32, i32) {
    %c0_i32 = arith.constant 0 : i32
    %c0_i32_0 = arith.constant 0 : i32
    return %arg0, %c0_i32 : i32, i32
  }
}

</mosaic_0001>

<llo_original>
// kernel: tpu_custom_call.1
$region0: #{tpu_custom_call.1}
  #allocation0 [shape = 'u32[]', space=smem, size = 0x4, offset = 0x4, fixed_abs, tag = 'smem constant byte address 0x4 - core index']
  #allocation1 [shape = 'u32[144,128]{1,0:T(1,128)}', space=vmem, size = 0x12000, scoped, tag = 'internal scratch']
  %s0 = inlined_call_operand.hbm [shape: f32[2,256], index: 0, kind: input, shape index: {}]
  %s1 = inlined_call_operand.vmem [shape: f32[2,32], index: 1, kind: input, shape index: {}]
  %s2 = inlined_call_operand.hbm [shape: f32[32,32], index: 2, kind: input, shape index: {}]
  %s3 = inlined_call_operand.hbm [shape: f32[2,256], index: 3, kind: output, shape index: {}]
  %s4 = sld [smem:[#allocation0]]
  $region30: #{tpu_custom_call.1} parent=0
    _
  %s6 = ssub.s32 1, %s4
  %s7 = scalar_select 0, %s6, %s4
  $region1: #{tpu_custom_call.1} parent=0
    #allocation2 [shape = 'u8[2048]{0}', space=vmem, size = 0x800, scoped, tag = 'input window, operand 0, single buffered']
    #allocation3 [shape = 's32[1]{0}', space=sflag, size = 0x4, scoped, tag = 'scoped memory for tpu_custom_call.1']
    #allocation4 [shape = 's32[1]{0}', space=sflag, size = 0x4, scoped, tag = 'scoped memory for tpu_custom_call.1']
    #allocation5 [shape = 'u8[16384]{0}', space=vmem, size = 0x4000, scoped, tag = 'input window, operand 2, single buffered']
    #allocation6 [shape = 's32[1]{0}', space=sflag, size = 0x4, scoped, tag = 'scoped memory for tpu_custom_call.1']
    #allocation7 [shape = 'u8[2048]{0}', space=vmem, size = 0x800, scoped, tag = 'output window, operand 0, single buffered']
    %8 = vsyncpa [#allocation3], 0
    %9 = vsyncpa [#allocation6], 0
    %10 = vsyncpa [#allocation4], 0
    // Predicated region
    $region2: #{tpu_custom_call.1} parent=1 // pred_check
      _
    $region3: #{tpu_custom_call.1} parent=1 // pred_check_branch
      %12 = sbr.rel (0) target = $region5
    $region4: #{tpu_custom_call.1} parent=1 // pred_region
      %s14 = ssub.s32 64, 64
      %15 = vsyncadd [#allocation3], %s14
      %s17 = sshll.u32 [#allocation2], 4
      %s18 = int_to_ptr.vmem [resolvable:$true] %s17
      %20 = dma.hbm_to_vmem [thread:$0]  %s0, 64, %s18, [#allocation3]
    $region5: #{tpu_custom_call.1} parent=1 // pred_fallthru
      _
    // Predicated region
    $region6: #{tpu_custom_call.1} parent=1 // pred_check
      _
    $region7: #{tpu_custom_call.1} parent=1 // pred_check_branch
      %22 = sbr.rel (0) target = $region9
    $region8: #{tpu_custom_call.1} parent=1 // pred_region
      _
    $region9: #{tpu_custom_call.1} parent=1 // pred_fallthru
      _
    // Predicated region
    $region10: #{tpu_custom_call.1} parent=1 // pred_check
      _
    $region11: #{tpu_custom_call.1} parent=1 // pred_check_branch
      %24 = sbr.rel (0) target = $region13
    $region12: #{tpu_custom_call.1} parent=1 // pred_region
      %s26 = ssub.s32 512, 512
      %27 = vsyncadd [#allocation6], %s26
      %s28 = sshll.u32 [#allocation5], 4
      %s29 = int_to_ptr.vmem [resolvable:$true] %s28
      %34 = dma.hbm_to_vmem [thread:$0]  %s2, 512, %s29, [#allocation6], 128, 128, 8
    $region13: #{tpu_custom_call.1} parent=1 // pred_fallthru
      _
    // Predicated region
    $region14: #{tpu_custom_call.1} parent=1 // pred_check
      _
    $region15: #{tpu_custom_call.1} parent=1 // pred_check_branch
      %36 = sbr.rel (0) target = $region17
    $region16: #{tpu_custom_call.1} parent=1 // pred_region
      %37 = dma.done [#allocation3], 64
    $region17: #{tpu_custom_call.1} parent=1 // pred_fallthru
      _
    // Predicated region
    $region18: #{tpu_custom_call.1} parent=1 // pred_check
      _
    $region19: #{tpu_custom_call.1} parent=1 // pred_check_branch
      %39 = sbr.rel (0) target = $region21
    $region20: #{tpu_custom_call.1} parent=1 // pred_region
      %40 = dma.done [#allocation6], 512
    $region21: #{tpu_custom_call.1} parent=1 // pred_fallthru
      _
    %v41 = vld [vmem:[%s1] sm:$0x3]
    %43 = vrot.lane.b32.xlu0 %v41, 32
    %v44 = vpop.permute.xlu0 %43
    %46 = vrot.lane.b32.xlu0 %v41, 64
    %v47 = vpop.permute.xlu0 %46
    %49 = vrot.lane.b32.xlu0 %v41, 96
    %v50 = vpop.permute.xlu0 %49
    %vm52 = vcmask 261120
    %v53 = vsel %vm52, %v41, %v44
    %vm54 = vcmask 523264
    %v55 = vsel %vm54, %v53, %v47
    %vm56 = vcmask 785408
    %v57 = vsel %vm56, %v55, %v50
    %v58 = vld [vmem:[#allocation2] sm:$0x3]
    %v59 = vadd.f32 %v58, %v57
    %v60 = vtanh.pop %v59
    %v61 = vadd.f32 %v60, 0.0
    %v62 = vld [vmem:[#allocation2 + $0x2] sm:$0x3]
    %v63 = vadd.f32 %v62, %v57
    %v64 = vtanh.pop %v63
    %v65 = vadd.f32 %v61, %v64
    %67 = vrot.lane.b32.xlu0 %v65, 96
    %v68 = vpop.permute.xlu0 %67
    %v70 = vadd.f32 %v65, %v68
    %71 = vrot.lane.b32.xlu0 %v65, 64
    %v72 = vpop.permute.xlu0 %71
    %v74 = vadd.f32 %v70, %v72
    %75 = vrot.lane.b32.xlu0 %v65, 32
    %v76 = vpop.permute.xlu0 %75
    %v78 = vadd.f32 %v74, %v76
    %v79 = vld [vmem:[#allocation5] sm:$0xff]
    %v80 = vld [vmem:[#allocation5 + $0x8] sm:$0xff]
    %v81 = vld [vmem:[#allocation5 + $0x10] sm:$0xff]
    %v82 = vld [vmem:[#allocation5 + $0x18] sm:$0xff]
    %v84 = vsel %vm52, %v78, 0
    %86 = vmatprep.subr.mxu0 0.0
    %87 = vmatpush1.msra.mxu0 %v79
    %88 = vmatprep.subr.mxu0 0.0
    %89 = vmatpush1.msra.mxu0 %v80
    %90 = vmatprep.subr.mxu0 0.0
    %91 = vmatpush1.msra.mxu0 %v81
    %92 = vmatprep.subr.mxu0 0.0
    %93 = vmatpush1.msra.mxu0 %v82
    %94 = vmatprep.subr.mxu0 0.0
    %95 = vmatpush1.msra.mxu0 0.0
    %96 = vmatprep.subr.mxu0 0.0
    %97 = vmatpush1.msra.mxu0 0.0
    %98 = vmatprep.subr.mxu0 0.0
    %99 = vmatpush1.msra.mxu0 0.0
    %100 = vmatprep.subr.mxu0 0.0
    %101 = vmatpush1.msra.mxu0 0.0
    %102 = vmatprep.subr.mxu0 0.0
    %103 = vmatpush1.msra.mxu0 0.0
    %104 = vmatprep.subr.mxu0 0.0
    %105 = vmatpush1.msra.mxu0 0.0
    %106 = vmatprep.subr.mxu0 0.0
    %107 = vmatpush1.msra.mxu0 0.0
    %108 = vmatprep.subr.mxu0 0.0
    %109 = vmatpush1.msra.mxu0 0.0
    %110 = vmatprep.subr.mxu0 0.0
    %111 = vmatpush1.msra.mxu0 0.0
    %112 = vmatprep.subr.mxu0 0.0
    %113 = vmatpush1.msra.mxu0 0.0
    %114 = vmatprep.subr.mxu0 0.0
    %115 = vmatpush1.msra.mxu0 0.0
    %116 = vmatprep.subr.mxu0 0.0
    %117 = vmatpush1.msra.mxu0 0.0
    %118 = vmatprep.subr.mxu0 0.0
    %119 = vmatpush1.msra.mxu0 0.0
    %120 = vmatprep.subr.mxu0 0.0
    %121 = vmatpush1.msra.mxu0 0.0
    %122 = vmatprep.subr.mxu0 0.0
    %123 = vmatpush1.msra.mxu0 0.0
    %124 = vmatprep.subr.mxu0 0.0
    %125 = vmatpush1.msra.mxu0 0.0
    %126 = vmatprep.subr.mxu0 0.0
    %127 = vmatpush1.msra.mxu0 0.0
    %128 = vmatprep.subr.mxu0 0.0
    %129 = vmatpush1.msra.mxu0 0.0
    %130 = vmatprep.subr.mxu0 0.0
    %131 = vmatpush1.msra.mxu0 0.0
    %132 = vmatprep.subr.mxu0 0.0
    %133 = vmatpush1.msra.mxu0 0.0
    %134 = vmatprep.subr.mxu0 0.0
    %135 = vmatpush1.msra.mxu0 0.0
    %136 = vmatprep.subr.mxu0 0.0
    %137 = vmatpush1.msra.mxu0 0.0
    %138 = vmatprep.subr.mxu0 0.0
    %139 = vmatpush1.msra.mxu0 0.0
    %140 = vmatprep.subr.mxu0 0.0
    %141 = vmatpush1.msra.mxu0 0.0
    %142 = vmatprep.subr.mxu0 0.0
    %143 = vmatpush1.msra.mxu0 0.0
    %144 = vmatprep.subr.mxu0 0.0
    %145 = vmatpush1.msra.mxu0 0.0
    %146 = vmatprep.subr.mxu0 0.0
    %147 = vmatpush1.msra.mxu0 0.0
    %148 = vmatprep.subr.mxu0 0.0
    %149 = vmatpush1.msra.mxu0 0.0
    %150 = vmatprep.mubr.f32.mxu0 0.0
    %151 = vmatmul.mubr.f32.gmra.mrb[0].mxu0 %v84
    %v152 = vpop.f32.mrb[0].mxu0
    %v153 = vadd.f32 0.0, %v152
    %v154 = vpop.f32.mrb[0].mxu0
    %155 = vdwg.mxu0
    %157 = vrot.lane.b32.xlu0 %v153, 32
    %v158 = vpop.permute.xlu0 %157
    %160 = vrot.lane.b32.xlu0 %v153, 64
    %v161 = vpop.permute.xlu0 %160
    %163 = vrot.lane.b32.xlu0 %v153, 96
    %v164 = vpop.permute.xlu0 %163
    %v166 = vsel %vm52, %v153, %v158
    %v167 = vsel %vm54, %v166, %v161
    %v168 = vsel %vm56, %v167, %v164
    %v169 = vmul.f32 %v58, %v168
    %170 = vst [vmem:[#allocation7] sm:$0x3] %v169
    %v171 = vld [vmem:[#allocation2 + $0x2] sm:$0x3]
    %v172 = vmul.f32 %v171, %v168
    %173 = vst [vmem:[#allocation7 + $0x2] sm:$0x3] %v172
    // Predicated region
    $region22: #{tpu_custom_call.1} parent=1 // pred_check
      _
    $region23: #{tpu_custom_call.1} parent=1 // pred_check_branch
      %175 = sbr.rel (0) target = $region25
    $region24: #{tpu_custom_call.1} parent=1 // pred_region
      %s177 = ssub.s32 64, 64
      %178 = vsyncadd [#allocation4], %s177
      %s180 = sshll.u32 [#allocation7], 4
      %s181 = int_to_ptr.vmem [resolvable:$true] %s180
      %183 = dma.vmem_to_hbm [thread:$0]  %s181, 64, %s3, [#allocation4]
    $region25: #{tpu_custom_call.1} parent=1 // pred_fallthru
      _
    // Predicated region
    $region26: #{tpu_custom_call.1} parent=1 // pred_check
      _
    $region27: #{tpu_custom_call.1} parent=1 // pred_check_branch
      %185 = sbr.rel (0) target = $region29
    $region28: #{tpu_custom_call.1} parent=1 // pred_region
      %186 = dma.done [#allocation4], 64
    $region29: #{tpu_custom_call.1} parent=1 // pred_fallthru
      _
    %187 = vsyncpa [#allocation3], 1
    %188 = vsyncpa [#allocation6], 1
    %189 = vsyncpa [#allocation4], 1

</llo_original>
